<compile_context>
chip_gen: v7x
topology: tpu7x:2x2x1
jax: 0.10.0
libtpu: 0.0.40
codegen_flags: <defaults>
</compile_context>

<pallas_src>
import functools

import jax
import jax.numpy as jnp
from jax.experimental import pallas as pl
from jax.experimental.pallas import tpu as pltpu


def _flash_attn_kernel(q_ref, k_ref, v_ref, cs_ref, o_ref,
                       qs_sc, m_sc, l_sc, acc_sc, *, use_bf16_exp=False):
    kv = pl.program_id(1)

    @pl.when(kv == 0)
    def _():
        # Hoisted once per (bh-group): fold 1/(scale_factor*inv_scale) into the
        # query rows instead of re-scaling q (or the score matrix) every KV tile.
        qs_sc[...] = (q_ref[...].astype(jnp.float32) * cs_ref[...]).astype(qs_sc.dtype)
        m_sc[...] = jnp.full_like(m_sc, -jnp.inf)
        l_sc[...] = jnp.zeros_like(l_sc)
        acc_sc[...] = jnp.zeros_like(acc_sc)

    # Contraction over the last (D) dim of both operands -> no explicit k.T /
    # XLU transpose; MXU consumes K directly, f32 accumulation.
    s = jnp.einsum("gqd,gkd->gqk", qs_sc[...], k_ref[...],
                   preferred_element_type=jnp.float32)          # (G, Sq, tk)

    # Online softmax update.
    m_prev = m_sc[...]
    m_new = jnp.maximum(m_prev, jnp.max(s, axis=-1, keepdims=True))
    alpha = jnp.exp(m_prev - m_new)
    if use_bf16_exp:
        # EUP relief on v6e/v7x only (v5e has no bf16 EUP) -- opt-in.
        p = jnp.exp((s - m_new).astype(jnp.bfloat16)).astype(jnp.float32)
    else:
        p = jnp.exp(s - m_new)
    l_sc[...] = alpha * l_sc[...] + jnp.sum(p, axis=-1, keepdims=True)
    acc_sc[...] = alpha * acc_sc[...] + jnp.einsum(
        "gqk,gkd->gqd", p.astype(v_ref.dtype), v_ref[...],
        preferred_element_type=jnp.float32)
    m_sc[...] = m_new

    # dropout_p == 0.0 -> identity (matches F.dropout(p=0.0)).
    @pl.when(kv == pl.num_programs(1) - 1)
    def _():
        # EUP approx reciprocal + one Newton-Raphson step (restores ~f32
        # accuracy; runs once per q block so the refinement is cheap).
        l = l_sc[...]
        inv_l = pl.reciprocal(l, approx=True)
        inv_l = inv_l * (2.0 - l * inv_l)
        o_ref[...] = (acc_sc[...] * inv_l).astype(o_ref.dtype)


def _pick_kv_tile(Sk):
    if Sk <= 512:
        return Sk
    for cand in (512, 256, 128, 64, 32, 16, 8):
        if Sk % cand == 0:
            return cand
    return Sk  # fallback: whole KV axis


def _vmem_capacity_bytes():
    """Per-TensorCore VMEM capacity, generation-aware with safe fallbacks."""
    cap = None
    try:
        cap = getattr(pltpu.get_tpu_info(), "vmem_capacity_bytes", None)
    except Exception:
        cap = None
    try:
        kind = jax.devices()[0].device_kind.lower()
    except Exception:
        kind = ""
    if "v7" in kind or "7x" in kind:
        known = 64 * 1024 * 1024           # v7x: 64 MiB per TC
    elif "v5" in kind or "v6" in kind:
        known = 128 * 1024 * 1024          # v5e/v6e: 128 MiB
    else:
        known = None
    if cap and known:
        return min(int(cap), known)
    if cap:
        return int(cap)
    if known:
        return known
    return 64 * 1024 * 1024                # conservative default (v7x-safe)


def _num_tensorcores():
    try:
        kind = jax.devices()[0].device_kind.lower()
    except Exception:
        return 1
    # v7x (and v4-class megacore devices) expose 2 TensorCores per device.
    if "v7" in kind or "7x" in kind or "v4" in kind:
        return 2
    return 1


def _block_vmem_bytes(G, Sq, tk, D, itemsize, kv_buffers):
    in_bytes = (2 * G * Sq * D * itemsize                 # q block (double-buffered)
                + 2 * kv_buffers * G * tk * D * itemsize  # k + v blocks
                + 2 * G * Sq * 4)                         # combined-scale block (f32)
    out_bytes = 2 * G * Sq * D * itemsize                 # output block (double-buffered)
    scratch = (G * Sq * D * itemsize                      # hoisted scaled-q scratch
               + G * Sq * D * 4                           # f32 accumulator
               + 2 * G * Sq * 4)                          # running max / denom
    temps = (2 * G * Sq * tk * 4                          # s and p live together
             + G * Sq * D * 4)                            # PV partial product
    return in_bytes + out_bytes + scratch + temps


def _pick_group(BH, Sq, tk, D, itemsize, budget, max_group, kv_buffers):
    """Largest divisor of BH (<= max_group) whose footprint fits the budget."""
    best = 1
    for g in range(1, max_group + 1):
        if BH % g:
            continue
        if _block_vmem_bytes(g, Sq, tk, D, itemsize, kv_buffers) > budget:
            continue
        best = g
    return best


def sdpa_pallas(q, k, v, scale_factor=None, inv_scale=None, dropout_p=0.0,
                *, kv_buffers=2, use_bf16_exp=False):
    """q: [B,H,Sq,D], k/v: [B,H,Sk,D], scale_factor: [B,H,Sq] or None,
    inv_scale: [B,H] or None.  Output dtype matches q.dtype."""
    assert dropout_p == 0.0, "only dropout_p=0.0 supported (identity)"
    # TODO(synk): dropout_p > 0 would need pltpu.prng_seed/prng_random_bits masking.
    B, H, Sq, D = q.shape
    Sk = k.shape[2]
    BH = B * H

    qf = q.reshape(BH, Sq, D)
    kf = k.reshape(BH, Sk, D)
    vf = v.reshape(BH, Sk, D)

    # Combined per-query-row reciprocal scale 1/(scale_factor*inv_scale).
    # The PyTorch module only scales when scale_factor is not None, so
    # inv_scale is intentionally ignored in that case (matches the spec).
    if scale_factor is None:
        cs = jnp.ones((BH, Sq, 1), jnp.float32)
    else:
        sf = scale_factor.astype(jnp.float32)
        if inv_scale is not None:
            sf = sf * inv_scale.astype(jnp.float32)[..., None]
        cs = (1.0 / sf).reshape(BH, Sq, 1)

    itemsize = jnp.dtype(q.dtype).itemsize
    vmem_cap = _vmem_capacity_bytes()
    budget = vmem_cap // 2                 # block-footprint budget (<= 0.5 * physical)
    vmem_limit = int(vmem_cap * 3 // 4)    # scoped-VMEM limit with headroom

    tk = _pick_kv_tile(Sk)
    # Keep >= 2 bh-group iterations on multi-TC chips so the "parallel" grid
    # axis can be sharded across both TensorCores (v7x); no cap on v5e/v6e.
    max_group = BH if (_num_tensorcores() < 2 or BH < 2) else max(1, BH // 2)
    G = _pick_group(BH, Sq, tk, D, itemsize, budget, max_group, kv_buffers)

    # Optional deeper KV buffering for DMA-exposed (decode-like) shapes.
    kv_spec = (functools.partial(pl.BlockSpec, pipeline_mode=pl.Buffered(kv_buffers))
               if kv_buffers != 2 else pl.BlockSpec)

    cost = pl.CostEstimate(
        flops=4 * BH * Sq * Sk * D,                  # QK^T + PV
        transcendentals=BH * Sq * Sk,                # exp
        bytes_accessed=(qf.size + kf.size + vf.size + BH * Sq * D) * itemsize
        + cs.size * 4,
    )

    kernel = functools.partial(_flash_attn_kernel, use_bf16_exp=use_bf16_exp)

    # NOTE: output block keeps the natural (G, Sq, D) layout; a lane-dense
    # (G, Sq*D) store was considered but skipped to avoid an in-kernel
    # sublane->lane reshape (store happens once per q-block, so it is not on
    # the KV-loop critical path).
    out = pl.pallas_call(
        kernel,
        out_shape=jax.ShapeDtypeStruct((BH, Sq, D), q.dtype),
        grid_spec=pltpu.PrefetchScalarGridSpec(
            num_scalar_prefetch=0,
            grid=(BH // G, Sk // tk),          # (parallel bh-groups, arbitrary KV)
            in_specs=[
                pl.BlockSpec((G, Sq, D), lambda i, j: (i, 0, 0)),
                kv_spec((G, tk, D), lambda i, j: (i, j, 0)),
                kv_spec((G, tk, D), lambda i, j: (i, j, 0)),
                pl.BlockSpec((G, Sq, 1), lambda i, j: (i, 0, 0)),
            ],
            out_specs=pl.BlockSpec((G, Sq, D), lambda i, j: (i, 0, 0)),
            scratch_shapes=[
                pltpu.VMEM((G, Sq, D), q.dtype),       # hoisted scaled-q
                pltpu.VMEM((G, Sq, 1), jnp.float32),   # running max
                pltpu.VMEM((G, Sq, 1), jnp.float32),   # running denom
                pltpu.VMEM((G, Sq, D), jnp.float32),   # output accumulator
            ],
        ),
        compiler_params=pltpu.CompilerParams(
            dimension_semantics=("parallel", "arbitrary"),
            vmem_limit_bytes=vmem_limit,
        ),
        cost_estimate=cost,
    )(qf, kf, vf, cs)

    return out.reshape(B, H, Sq, D)


def _reference(q, k, v, scale_factor=None, inv_scale=None):
    qk = jnp.einsum("bhqd,bhkd->bhqk", q, k)
    if scale_factor is not None:
        qk = qk / scale_factor[..., None] / inv_scale[..., None, None]
    p = jax.nn.softmax(qk, axis=-1)
    return jnp.einsum("bhqk,bhkd->bhqd", p, v)


if __name__ == "__main__":
    key = jax.random.PRNGKey(0)
    B, H, Sq, Sk, D = 2, 2, 8, 8, 32
    k1, k2, k3, k4, k5 = jax.random.split(key, 5)
    q = jax.random.normal(k1, (B, H, Sq, D), jnp.float32)
    k = jax.random.normal(k2, (B, H, Sk, D), jnp.float32)
    v = jax.random.normal(k3, (B, H, Sk, D), jnp.float32)
    scale_factor = jax.random.uniform(k4, (B, H, Sq), jnp.float32, 0.5, 2.0)
    inv_scale = jax.random.uniform(k5, (B, H), jnp.float32, 0.5, 2.0)

    # With scales.
    out = sdpa_pallas(q, k, v, scale_factor, inv_scale, dropout_p=0.0)
    out = jax.block_until_ready(out)
    ref = _reference(q, k, v, scale_factor, inv_scale)
    assert out.shape == (B, H, Sq, D)
    assert out.dtype == q.dtype
    assert jnp.allclose(out, ref, atol=5e-5, rtol=5e-5), "mismatch vs reference"

    # Without scales (scale_factor is None branch of the module).
    out2 = sdpa_pallas(q, k, v, None, None, dropout_p=0.0)
    out2 = jax.block_until_ready(out2)
    ref2 = _reference(q, k, v, None, None)
    assert jnp.allclose(out2, ref2, atol=5e-5, rtol=5e-5), "mismatch (no scales)"

    print("KERNEL_OK")
</pallas_src>

<mosaic_0001>
module attributes {stable_mosaic.version = 11 : i64} {
  func.func @_flash_attn_kernel(%arg0: i32, %arg1: i32, %arg2: memref<4x8x32xf32, #tpu.memory_space<vmem>>, %arg3: memref<4x8x32xf32, #tpu.memory_space<vmem>>, %arg4: memref<4x8x32xf32, #tpu.memory_space<vmem>>, %arg5: memref<4x8x1xf32, #tpu.memory_space<vmem>>, %arg6: memref<4x8x32xf32, #tpu.memory_space<vmem>>, %arg7: memref<4x8x32xf32, #tpu.memory_space<vmem>>, %arg8: memref<4x8x1xf32, #tpu.memory_space<vmem>>, %arg9: memref<4x8x1xf32, #tpu.memory_space<vmem>>, %arg10: memref<4x8x32xf32, #tpu.memory_space<vmem>>) attributes {dimension_semantics = [#tpu.dimension_semantics<parallel>, #tpu.dimension_semantics<arbitrary>], iteration_bounds = array<i64: 1, 1>, scalar_prefetch = 0 : i64, scratch_operands = 4 : i64, tpu.core_type = #tpu.core_type<tc>, window_params = [{transform_indices = @transform_0, window_bounds = array<i64: 4, 8, 32>}, {transform_indices = @transform_1, window_bounds = array<i64: 4, 8, 32>}, {transform_indices = @transform_2, window_bounds = array<i64: 4, 8, 32>}, {transform_indices = @transform_3, window_bounds = array<i64: 4, 8, 1>}, {transform_indices = @transform_4, window_bounds = array<i64: 4, 8, 32>}]} {
    %c0_i32 = arith.constant 0 : i32
    %0 = arith.cmpi eq, %arg1, %c0_i32 : i32
    %1 = arith.extui %0 : i1 to i32
    %c0_i32_0 = arith.constant 0 : i32
    %2 = arith.cmpi ne, %1, %c0_i32_0 : i32
    scf.if %2 {
      %c0_32 = arith.constant 0 : index
      %c0_33 = arith.constant 0 : index
      %c0_34 = arith.constant 0 : index
      %32 = vector.load %arg2[%c0_32, %c0_33, %c0_34] : memref<4x8x32xf32, #tpu.memory_space<vmem>>, vector<4x8x32xf32>
      %c0_35 = arith.constant 0 : index
      %c0_36 = arith.constant 0 : index
      %c0_37 = arith.constant 0 : index
      %33 = vector.load %arg5[%c0_35, %c0_36, %c0_37] : memref<4x8x1xf32, #tpu.memory_space<vmem>>, vector<4x8x1xf32>
      %34 = vector.broadcast %33 : vector<4x8x1xf32> to vector<4x8x32xf32>
      %35 = arith.mulf %32, %34 : vector<4x8x32xf32>
      %c0_38 = arith.constant 0 : index
      %c0_39 = arith.constant 0 : index
      %c0_40 = arith.constant 0 : index
      %36 = vector.load %arg7[%c0_38, %c0_39, %c0_40] : memref<4x8x32xf32, #tpu.memory_space<vmem>>, vector<4x8x32xf32>
      tpu.vector_store %arg7[%c0_38, %c0_39, %c0_40], %35 {strides = array<i32>} : memref<4x8x32xf32, #tpu.memory_space<vmem>>, vector<4x8x32xf32>,
      %cst_41 = arith.constant 0xFF800000 : f32
      %37 = vector.broadcast %cst_41 : f32 to vector<4x8x1xf32>
      %c0_42 = arith.constant 0 : index
      %c0_43 = arith.constant 0 : index
      %c0_44 = arith.constant 0 : index
      %38 = vector.load %arg8[%c0_42, %c0_43, %c0_44] : memref<4x8x1xf32, #tpu.memory_space<vmem>>, vector<4x8x1xf32>
      tpu.vector_store %arg8[%c0_42, %c0_43, %c0_44], %37 {strides = array<i32>} : memref<4x8x1xf32, #tpu.memory_space<vmem>>, vector<4x8x1xf32>,
      %cst_45 = arith.constant 0.000000e+00 : f32
      %39 = vector.broadcast %cst_45 : f32 to vector<4x8x1xf32>
      %c0_46 = arith.constant 0 : index
      %c0_47 = arith.constant 0 : index
      %c0_48 = arith.constant 0 : index
      %40 = vector.load %arg9[%c0_46, %c0_47, %c0_48] : memref<4x8x1xf32, #tpu.memory_space<vmem>>, vector<4x8x1xf32>
      tpu.vector_store %arg9[%c0_46, %c0_47, %c0_48], %39 {strides = array<i32>} : memref<4x8x1xf32, #tpu.memory_space<vmem>>, vector<4x8x1xf32>,
      %cst_49 = arith.constant 0.000000e+00 : f32
      %41 = vector.broadcast %cst_49 : f32 to vector<4x8x32xf32>
      %c0_50 = arith.constant 0 : index
      %c0_51 = arith.constant 0 : index
      %c0_52 = arith.constant 0 : index
      %42 = vector.load %arg10[%c0_50, %c0_51, %c0_52] : memref<4x8x32xf32, #tpu.memory_space<vmem>>, vector<4x8x32xf32>
      tpu.vector_store %arg10[%c0_50, %c0_51, %c0_52], %41 {strides = array<i32>} : memref<4x8x32xf32, #tpu.memory_space<vmem>>, vector<4x8x32xf32>,
    } else {
    }
    %c0 = arith.constant 0 : index
    %c0_1 = arith.constant 0 : index
    %c0_2 = arith.constant 0 : index
    %3 = vector.load %arg7[%c0, %c0_1, %c0_2] : memref<4x8x32xf32, #tpu.memory_space<vmem>>, vector<4x8x32xf32>
    %c0_3 = arith.constant 0 : index
    %c0_4 = arith.constant 0 : index
    %c0_5 = arith.constant 0 : index
    %4 = vector.load %arg3[%c0_3, %c0_4, %c0_5] : memref<4x8x32xf32, #tpu.memory_space<vmem>>, vector<4x8x32xf32>
    "tpu.trace_start"() <{level = 10 : i32, message = "gqd,gkd->gqk"}> : () -> ()
    %cst = arith.constant dense<0.000000e+00> : vector<4x8x8xf32>
    %5 = tpu.matmul %3, %4, %cst {dimension_numbers = #tpu.dot_dimension_numbers<[2], [2], [1], [1], [0, 0, 0, 1, 1, 1], [0], [0]>} : vector<4x8x32xf32>, vector<4x8x32xf32>, vector<4x8x8xf32> -> vector<4x8x8xf32>
    "tpu.trace_stop"() : () -> ()
    %c0_6 = arith.constant 0 : index
    %c0_7 = arith.constant 0 : index
    %c0_8 = arith.constant 0 : index
    %6 = vector.load %arg8[%c0_6, %c0_7, %c0_8] : memref<4x8x1xf32, #tpu.memory_space<vmem>>, vector<4x8x1xf32>
    %cst_9 = arith.constant dense<0xFF800000> : vector<4x8xf32>
    %7 = vector.multi_reduction <maximumf>, %5, %cst_9 [2] : vector<4x8x8xf32> to vector<4x8xf32>
    %8 = vector.shape_cast %7 : vector<4x8xf32> to vector<4x8x1xf32>
    %9 = arith.maximumf %6, %8 : vector<4x8x1xf32>
    %10 = arith.subf %6, %9 : vector<4x8x1xf32>
    %11 = math.exp %10 : vector<4x8x1xf32>
    %12 = vector.broadcast %9 : vector<4x8x1xf32> to vector<4x8x8xf32>
    %13 = arith.subf %5, %12 : vector<4x8x8xf32>
    %14 = math.exp %13 : vector<4x8x8xf32>
    %c0_10 = arith.constant 0 : index
    %c0_11 = arith.constant 0 : index
    %c0_12 = arith.constant 0 : index
    %15 = vector.load %arg9[%c0_10, %c0_11, %c0_12] : memref<4x8x1xf32, #tpu.memory_space<vmem>>, vector<4x8x1xf32>
    %16 = arith.mulf %11, %15 : vector<4x8x1xf32>
    %cst_13 = arith.constant dense<0.000000e+00> : vector<4x8xf32>
    %17 = vector.multi_reduction <add>, %14, %cst_13 [2] : vector<4x8x8xf32> to vector<4x8xf32>
    %18 = vector.shape_cast %17 : vector<4x8xf32> to vector<4x8x1xf32>
    %19 = arith.addf %16, %18 : vector<4x8x1xf32>
    %c0_14 = arith.constant 0 : index
    %c0_15 = arith.constant 0 : index
    %c0_16 = arith.constant 0 : index
    %20 = vector.load %arg9[%c0_14, %c0_15, %c0_16] : memref<4x8x1xf32, #tpu.memory_space<vmem>>, vector<4x8x1xf32>
    tpu.vector_store %arg9[%c0_14, %c0_15, %c0_16], %19 {strides = array<i32>} : memref<4x8x1xf32, #tpu.memory_space<vmem>>, vector<4x8x1xf32>,
    %c0_17 = arith.constant 0 : index
    %c0_18 = arith.constant 0 : index
    %c0_19 = arith.constant 0 : index
    %21 = vector.load %arg10[%c0_17, %c0_18, %c0_19] : memref<4x8x32xf32, #tpu.memory_space<vmem>>, vector<4x8x32xf32>
    %22 = vector.broadcast %11 : vector<4x8x1xf32> to vector<4x8x32xf32>
    %23 = arith.mulf %22, %21 : vector<4x8x32xf32>
    %c0_20 = arith.constant 0 : index
    %c0_21 = arith.constant 0 : index
    %c0_22 = arith.constant 0 : index
    %24 = vector.load %arg4[%c0_20, %c0_21, %c0_22] : memref<4x8x32xf32, #tpu.memory_space<vmem>>, vector<4x8x32xf32>
    "tpu.trace_start"() <{level = 10 : i32, message = "gqk,gkd->gqd"}> : () -> ()
    %cst_23 = arith.constant dense<0.000000e+00> : vector<4x8x32xf32>
    %25 = tpu.matmul %14, %24, %cst_23 {dimension_numbers = #tpu.dot_dimension_numbers<[2], [1], [1], [2], [0, 0, 0, 1, 1, 2], [0], [0]>} : vector<4x8x8xf32>, vector<4x8x32xf32>, vector<4x8x32xf32> -> vector<4x8x32xf32>
    "tpu.trace_stop"() : () -> ()
    %26 = arith.addf %23, %25 : vector<4x8x32xf32>
    %c0_24 = arith.constant 0 : index
    %c0_25 = arith.constant 0 : index
    %c0_26 = arith.constant 0 : index
    %27 = vector.load %arg10[%c0_24, %c0_25, %c0_26] : memref<4x8x32xf32, #tpu.memory_space<vmem>>, vector<4x8x32xf32>
    tpu.vector_store %arg10[%c0_24, %c0_25, %c0_26], %26 {strides = array<i32>} : memref<4x8x32xf32, #tpu.memory_space<vmem>>, vector<4x8x32xf32>,
    %c0_27 = arith.constant 0 : index
    %c0_28 = arith.constant 0 : index
    %c0_29 = arith.constant 0 : index
    %28 = vector.load %arg8[%c0_27, %c0_28, %c0_29] : memref<4x8x1xf32, #tpu.memory_space<vmem>>, vector<4x8x1xf32>
    tpu.vector_store %arg8[%c0_27, %c0_28, %c0_29], %9 {strides = array<i32>} : memref<4x8x1xf32, #tpu.memory_space<vmem>>, vector<4x8x1xf32>,
    %c0_i32_30 = arith.constant 0 : i32
    %29 = arith.cmpi eq, %arg1, %c0_i32_30 : i32
    %30 = arith.extui %29 : i1 to i32
    %c0_i32_31 = arith.constant 0 : i32
    %31 = arith.cmpi ne, %30, %c0_i32_31 : i32
    scf.if %31 {
      %c0_32 = arith.constant 0 : index
      %c0_33 = arith.constant 0 : index
      %c0_34 = arith.constant 0 : index
      %32 = vector.load %arg9[%c0_32, %c0_33, %c0_34] : memref<4x8x1xf32, #tpu.memory_space<vmem>>, vector<4x8x1xf32>
      %33 = tpu.reciprocal %32 {approx = true} : vector<4x8x1xf32> -> vector<4x8x1xf32>
      %34 = arith.mulf %32, %33 : vector<4x8x1xf32>
      %cst_35 = arith.constant 2.000000e+00 : f32
      %35 = vector.broadcast %cst_35 : f32 to vector<4x8x1xf32>
      %36 = arith.subf %35, %34 : vector<4x8x1xf32>
      %37 = arith.mulf %33, %36 : vector<4x8x1xf32>
      %c0_36 = arith.constant 0 : index
      %c0_37 = arith.constant 0 : index
      %c0_38 = arith.constant 0 : index
      %38 = vector.load %arg10[%c0_36, %c0_37, %c0_38] : memref<4x8x32xf32, #tpu.memory_space<vmem>>, vector<4x8x32xf32>
      %39 = vector.broadcast %37 : vector<4x8x1xf32> to vector<4x8x32xf32>
      %40 = arith.mulf %38, %39 : vector<4x8x32xf32>
      %c0_39 = arith.constant 0 : index
      %c0_40 = arith.constant 0 : index
      %c0_41 = arith.constant 0 : index
      %41 = vector.load %arg6[%c0_39, %c0_40, %c0_41] : memref<4x8x32xf32, #tpu.memory_space<vmem>>, vector<4x8x32xf32>
      tpu.vector_store %arg6[%c0_39, %c0_40, %c0_41], %40 {strides = array<i32>} : memref<4x8x32xf32, #tpu.memory_space<vmem>>, vector<4x8x32xf32>,
    } else {
    }
    return
  }
  func.func @transform_0(%arg0: i32, %arg1: i32) -> (i32, i32, i32) {
    %c0_i32 = arith.constant 0 : i32
    %c0_i32_0 = arith.constant 0 : i32
    %c0_i32_1 = arith.constant 0 : i32
    return %arg0, %c0_i32, %c0_i32_0 : i32, i32, i32
  }
  func.func @transform_1(%arg0: i32, %arg1: i32) -> (i32, i32, i32) {
    %c0_i32 = arith.constant 0 : i32
    %c0_i32_0 = arith.constant 0 : i32
    return %arg0, %arg1, %c0_i32 : i32, i32, i32
  }
  func.func @transform_2(%arg0: i32, %arg1: i32) -> (i32, i32, i32) {
    %c0_i32 = arith.constant 0 : i32
    %c0_i32_0 = arith.constant 0 : i32
    return %arg0, %arg1, %c0_i32 : i32, i32, i32
  }
  func.func @transform_3(%arg0: i32, %arg1: i32) -> (i32, i32, i32) {
    %c0_i32 = arith.constant 0 : i32
    %c0_i32_0 = arith.constant 0 : i32
    %c0_i32_1 = arith.constant 0 : i32
    return %arg0, %c0_i32, %c0_i32_0 : i32, i32, i32
  }
  func.func @transform_4(%arg0: i32, %arg1: i32) -> (i32, i32, i32) {
    %c0_i32 = arith.constant 0 : i32
    %c0_i32_0 = arith.constant 0 : i32
    %c0_i32_1 = arith.constant 0 : i32
    return %arg0, %c0_i32, %c0_i32_0 : i32, i32, i32
  }
}

</mosaic_0001>

<llo_original>
// kernel: tpu_custom_call.1
$region0: #{tpu_custom_call.1}
  #allocation0 [shape = 'u32[]', space=smem, size = 0x4, offset = 0x4, fixed_abs, tag = 'smem constant byte address 0x4 - core index']
  #allocation1 [shape = 'u32[144,128]{1,0:T(1,128)}', space=vmem, size = 0x12000, scoped, tag = 'internal scratch']
  #allocation2 [shape = 'f32[4,8,32]{2,1,0:T(8,128)}', space=vmem, size = 0x4000, scoped, tag = 'scratch operand']
  #allocation3 [shape = 'f32[4,8,1]{2,1,0:T(8,128)}', space=vmem, size = 0x4000, scoped, tag = 'scratch operand']
  #allocation4 [shape = 'f32[4,8,1]{2,1,0:T(8,128)}', space=vmem, size = 0x4000, scoped, tag = 'scratch operand']
  #allocation5 [shape = 'f32[4,8,32]{2,1,0:T(8,128)}', space=vmem, size = 0x4000, scoped, tag = 'scratch operand']
  %s0 = inlined_call_operand.vmem [shape: f32[4,8,32], index: 0, kind: input, shape index: {}]
  %s1 = inlined_call_operand.hbm [shape: f32[4,8,32], index: 1, kind: input, shape index: {}]
  %s2 = inlined_call_operand.hbm [shape: f32[4,8,32], index: 2, kind: input, shape index: {}]
  %s3 = inlined_call_operand.vmem [shape: f32[4,8,1], index: 3, kind: input, shape index: {}]
  %s4 = inlined_call_operand.hbm [shape: f32[4,8,32], index: 4, kind: output, shape index: {}]
  %s5 = sld [smem:[#allocation0]]
  $region42: #{tpu_custom_call.1} parent=0
    _
  %s7 = ssub.s32 1, %s5
  %s8 = scalar_select 0, %s7, %s5
  $region1: #{tpu_custom_call.1} parent=0
    #allocation6 [shape = 'u8[16384]{0}', space=vmem, size = 0x4000, scoped, tag = 'input window, operand 1, single buffered']
    #allocation7 [shape = 's32[1]{0}', space=sflag, size = 0x4, scoped, tag = 'scoped memory for tpu_custom_call.1']
    #allocation8 [shape = 's32[1]{0}', space=sflag, size = 0x4, scoped, tag = 'scoped memory for tpu_custom_call.1']
    #allocation9 [shape = 'u8[16384]{0}', space=vmem, size = 0x4000, scoped, tag = 'input window, operand 2, single buffered']
    #allocation10 [shape = 's32[1]{0}', space=sflag, size = 0x4, scoped, tag = 'scoped memory for tpu_custom_call.1']
    #allocation11 [shape = 'u8[16384]{0}', space=vmem, size = 0x4000, scoped, tag = 'output window, operand 0, single buffered']
    %9 = vsyncpa [#allocation7], 0
    %10 = vsyncpa [#allocation10], 0
    %11 = vsyncpa [#allocation8], 0
    // Predicated region
    $region2: #{tpu_custom_call.1} parent=1 // pred_check
      _
    $region3: #{tpu_custom_call.1} parent=1 // pred_check_branch
      %13 = sbr.rel (0) target = $region5
    $region4: #{tpu_custom_call.1} parent=1 // pred_region
      _
    $region5: #{tpu_custom_call.1} parent=1 // pred_fallthru
      _
    // Predicated region
    $region6: #{tpu_custom_call.1} parent=1 // pred_check
      _
    $region7: #{tpu_custom_call.1} parent=1 // pred_check_branch
      %15 = sbr.rel (0) target = $region9
    $region8: #{tpu_custom_call.1} parent=1 // pred_region
      %s17 = ssub.s32 512, 512
      %18 = vsyncadd [#allocation7], %s17
      %s19 = sshll.u32 [#allocation6], 4
      %s20 = int_to_ptr.vmem [resolvable:$true] %s19
      %25 = dma.hbm_to_vmem [thread:$0]  %s1, 512, %s20, [#allocation7], 128, 128, 8
    $region9: #{tpu_custom_call.1} parent=1 // pred_fallthru
      _
    // Predicated region
    $region10: #{tpu_custom_call.1} parent=1 // pred_check
      _
    $region11: #{tpu_custom_call.1} parent=1 // pred_check_branch
      %27 = sbr.rel (0) target = $region13
    $region12: #{tpu_custom_call.1} parent=1 // pred_region
      %s29 = ssub.s32 512, 512
      %30 = vsyncadd [#allocation10], %s29
      %s31 = sshll.u32 [#allocation9], 4
      %s32 = int_to_ptr.vmem [resolvable:$true] %s31
      %37 = dma.hbm_to_vmem [thread:$0]  %s2, 512, %s32, [#allocation10], 128, 128, 8
    $region13: #{tpu_custom_call.1} parent=1 // pred_fallthru
      _
    // Predicated region
    $region14: #{tpu_custom_call.1} parent=1 // pred_check
      _
    $region15: #{tpu_custom_call.1} parent=1 // pred_check_branch
      %39 = sbr.rel (0) target = $region17
    $region16: #{tpu_custom_call.1} parent=1 // pred_region
      _
    $region17: #{tpu_custom_call.1} parent=1 // pred_fallthru
      _
    // Predicated region
    $region18: #{tpu_custom_call.1} parent=1 // pred_check
      _
    $region19: #{tpu_custom_call.1} parent=1 // pred_check_branch
      %41 = sbr.rel (0) target = $region21
    $region20: #{tpu_custom_call.1} parent=1 // pred_region
      %42 = dma.done [#allocation7], 512
    $region21: #{tpu_custom_call.1} parent=1 // pred_fallthru
      _
    // Predicated region
    $region22: #{tpu_custom_call.1} parent=1 // pred_check
      _
    $region23: #{tpu_custom_call.1} parent=1 // pred_check_branch
      %44 = sbr.rel (0) target = $region25
    $region24: #{tpu_custom_call.1} parent=1 // pred_region
      %45 = dma.done [#allocation10], 512
    $region25: #{tpu_custom_call.1} parent=1 // pred_fallthru
      _
    %p46 = scmp.eq.s32.totalorder 0, 0
    // Predicated region
    $region26: #{tpu_custom_call.1} parent=1 // pred_check
      %p47 = pneg %p46
    $region27: #{tpu_custom_call.1} parent=1 // pred_check_branch
      %49 = sbr.rel (%p47) target = $region29
    $region28: #{tpu_custom_call.1} parent=1 // pred_region
      %v50 = vld [vmem:[%s0] sm:$0xff]
      %v51 = vld [vmem:[%s0 + $0x8] sm:$0xff]
      %v52 = vld [vmem:[%s0 + $0x10] sm:$0xff]
      %v53 = vld [vmem:[%s0 + $0x18] sm:$0xff]
      %v54 = vld [vmem:[%s3] sm:$0xff]
      %v55 = vld [vmem:[%s3 + $0x8] sm:$0xff]
      %v56 = vld [vmem:[%s3 + $0x10] sm:$0xff]
      %v57 = vld [vmem:[%s3 + $0x18] sm:$0xff]
      %59 = vset.pattern.permute.xlu0 0
      %60 = vperm.xlu0 %59, %v54
      %v61 = vpop.permute.xlu0 %60
      %64 = vset.pattern.permute.xlu0 0
      %65 = vperm.xlu0 %64, %v55
      %v66 = vpop.permute.xlu0 %65
      %69 = vset.pattern.permute.xlu0 0
      %70 = vperm.xlu0 %69, %v56
      %v71 = vpop.permute.xlu0 %70
      %74 = vset.pattern.permute.xlu0 0
      %75 = vperm.xlu0 %74, %v57
      %v76 = vpop.permute.xlu0 %75
      %v78 = vmul.f32 %v50, %v61
      %v79 = vmul.f32 %v51, %v66
      %v80 = vmul.f32 %v52, %v71
      %v81 = vmul.f32 %v53, %v76
      %vm82 = vcmask 261120
      %83 = vst.msk [vmem:[#allocation2] sm:$0xff] %vm82, %v78
      %84 = vst.msk [vmem:[#allocation2 + $0x8] sm:$0xff] %vm82, %v79
      %85 = vst.msk [vmem:[#allocation2 + $0x10] sm:$0xff] %vm82, %v80
      %86 = vst.msk [vmem:[#allocation2 + $0x18] sm:$0xff] %vm82, %v81
      %vm87 = vcmask 7168
      %88 = vst.msk [vmem:[#allocation3] sm:$0xff] %vm87, -inf
      %89 = vst.msk [vmem:[#allocation3 + $0x8] sm:$0xff] %vm87, -inf
      %90 = vst.msk [vmem:[#allocation3 + $0x10] sm:$0xff] %vm87, -inf
      %91 = vst.msk [vmem:[#allocation3 + $0x18] sm:$0xff] %vm87, -inf
      %92 = vst.msk [vmem:[#allocation4] sm:$0xff] %vm87, 0.0
      %93 = vst.msk [vmem:[#allocation4 + $0x8] sm:$0xff] %vm87, 0.0
      %94 = vst.msk [vmem:[#allocation4 + $0x10] sm:$0xff] %vm87, 0.0
      %95 = vst.msk [vmem:[#allocation4 + $0x18] sm:$0xff] %vm87, 0.0
      %96 = vst.msk [vmem:[#allocation5] sm:$0xff] %vm82, 0.0
      %97 = vst.msk [vmem:[#allocation5 + $0x8] sm:$0xff] %vm82, 0.0
      %98 = vst.msk [vmem:[#allocation5 + $0x10] sm:$0xff] %vm82, 0.0
      %99 = vst.msk [vmem:[#allocation5 + $0x18] sm:$0xff] %vm82, 0.0
    $region29: #{tpu_custom_call.1} parent=1 // pred_fallthru
      _
    %v100 = vld [vmem:[#allocation2] sm:$0xff]
    %v101 = vld [vmem:[#allocation2 + $0x8] sm:$0xff]
    %v102 = vld [vmem:[#allocation2 + $0x10] sm:$0xff]
    %v103 = vld [vmem:[#allocation2 + $0x18] sm:$0xff]
    %v104 = vld [vmem:[#allocation6] sm:$0xff]
    %v105 = vld [vmem:[#allocation6 + $0x8] sm:$0xff]
    %v106 = vld [vmem:[#allocation6 + $0x10] sm:$0xff]
    %v107 = vld [vmem:[#allocation6 + $0x18] sm:$0xff]
    %vm108 = vcmask 261120
    %v110 = vsel %vm108, %v100, 0
    %v113 = vsel %vm108, %v104, 0
    %115 = vmatprep.subr.mxu0 0.0
    %116 = vmatpush1.xpose.msra.mxu0 %v113
    %117 = vmatprep.subr.mxu0 0.0
    %118 = vmatpush1.xpose.msra.mxu0 0.0
    %119 = vmatprep.subr.mxu0 0.0
    %120 = vmatpush1.xpose.msra.mxu0 0.0
    %121 = vmatprep.subr.mxu0 0.0
    %122 = vmatpush1.xpose.msra.mxu0 0.0
    %123 = vmatprep.subr.mxu0 0.0
    %124 = vmatpush1.xpose.msra.mxu0 0.0
    %125 = vmatprep.subr.mxu0 0.0
    %126 = vmatpush1.xpose.msra.mxu0 0.0
    %127 = vmatprep.subr.mxu0 0.0
    %128 = vmatpush1.xpose.msra.mxu0 0.0
    %129 = vmatprep.subr.mxu0 0.0
    %130 = vmatpush1.xpose.msra.mxu0 0.0
    %131 = vmatprep.subr.mxu0 0.0
    %132 = vmatpush1.xpose.msra.mxu0 0.0
    %133 = vmatprep.subr.mxu0 0.0
    %134 = vmatpush1.xpose.msra.mxu0 0.0
    %135 = vmatprep.subr.mxu0 0.0
    %136 = vmatpush1.xpose.msra.mxu0 0.0
    %137 = vmatprep.subr.mxu0 0.0
    %138 = vmatpush1.xpose.msra.mxu0 0.0
    %139 = vmatprep.subr.mxu0 0.0
    %140 = vmatpush1.xpose.msra.mxu0 0.0
    %141 = vmatprep.subr.mxu0 0.0
    %142 = vmatpush1.xpose.msra.mxu0 0.0
    %143 = vmatprep.subr.mxu0 0.0
    %144 = vmatpush1.xpose.msra.mxu0 0.0
    %145 = vmatprep.subr.mxu0 0.0
    %146 = vmatpush1.xpose.msra.mxu0 0.0
    %147 = vmatprep.subr.mxu0 0.0
    %148 = vmatpush1.xpose.msra.mxu0 0.0
    %149 = vmatprep.subr.mxu0 0.0
    %150 = vmatpush1.xpose.msra.mxu0 0.0
    %151 = vmatprep.subr.mxu0 0.0
    %152 = vmatpush1.xpose.msra.mxu0 0.0
    %153 = vmatprep.subr.mxu0 0.0
    %154 = vmatpush1.xpose.msra.mxu0 0.0
    %155 = vmatprep.subr.mxu0 0.0
    %156 = vmatpush1.xpose.msra.mxu0 0.0
    %157 = vmatprep.subr.mxu0 0.0
    %158 = vmatpush1.xpose.msra.mxu0 0.0
    %159 = vmatprep.subr.mxu0 0.0
    %160 = vmatpush1.xpose.msra.mxu0 0.0
    %161 = vmatprep.subr.mxu0 0.0
    %162 = vmatpush1.xpose.msra.mxu0 0.0
    %163 = vmatprep.subr.mxu0 0.0
    %164 = vmatpush1.xpose.msra.mxu0 0.0
    %165 = vmatprep.subr.mxu0 0.0
    %166 = vmatpush1.xpose.msra.mxu0 0.0
    %167 = vmatprep.subr.mxu0 0.0
    %168 = vmatpush1.xpose.msra.mxu0 0.0
    %169 = vmatprep.subr.mxu0 0.0
    %170 = vmatpush1.xpose.msra.mxu0 0.0
    %171 = vmatprep.subr.mxu0 0.0
    %172 = vmatpush1.xpose.msra.mxu0 0.0
    %173 = vmatprep.subr.mxu0 0.0
    %174 = vmatpush1.xpose.msra.mxu0 0.0
    %175 = vmatprep.subr.mxu0 0.0
    %176 = vmatpush1.xpose.msra.mxu0 0.0
    %177 = vmatprep.subr.mxu0 0.0
    %178 = vmatpush1.xpose.msra.mxu0 0.0
    %179 = vmatprep.mubr.f32.mxu0 0.0
    %180 = vmatmul.mubr.f32.gmra.mrb[0].mxu0 %v110
    %v181 = vpop.f32.mrb[0].mxu0
    %v182 = vadd.f32 0.0, %v181
    %v183 = vpop.f32.mrb[0].mxu0
    %184 = vdwg.mxu0
    %v186 = vsel %vm108, %v101, 0
    %v189 = vsel %vm108, %v105, 0
    %191 = vmatprep.subr.mxu0 0.0
    %192 = vmatpush1.xpose.msra.mxu0 %v189
    %193 = vmatprep.subr.mxu0 0.0
    %194 = vmatpush1.xpose.msra.mxu0 0.0
    %195 = vmatprep.subr.mxu0 0.0
    %196 = vmatpush1.xpose.msra.mxu0 0.0
    %197 = vmatprep.subr.mxu0 0.0
    %198 = vmatpush1.xpose.msra.mxu0 0.0
    %199 = vmatprep.subr.mxu0 0.0
    %200 = vmatpush1.xpose.msra.mxu0 0.0
    %201 = vmatprep.subr.mxu0 0.0
    %202 = vmatpush1.xpose.msra.mxu0 0.0
    %203 = vmatprep.subr.mxu0 0.0
    %204 = vmatpush1.xpose.msra.mxu0 0.0
    %205 = vmatprep.subr.mxu0 0.0
    %206 = vmatpush1.xpose.msra.mxu0 0.0
    %207 = vmatprep.subr.mxu0 0.0
    %208 = vmatpush1.xpose.msra.mxu0 0.0
    %209 = vmatprep.subr.mxu0 0.0
    %210 = vmatpush1.xpose.msra.mxu0 0.0
    %211 = vmatprep.subr.mxu0 0.0
    %212 = vmatpush1.xpose.msra.mxu0 0.0
    %213 = vmatprep.subr.mxu0 0.0
    %214 = vmatpush1.xpose.msra.mxu0 0.0
    %215 = vmatprep.subr.mxu0 0.0
    %216 = vmatpush1.xpose.msra.mxu0 0.0
    %217 = vmatprep.subr.mxu0 0.0
    %218 = vmatpush1.xpose.msra.mxu0 0.0
    %219 = vmatprep.subr.mxu0 0.0
    %220 = vmatpush1.xpose.msra.mxu0 0.0
    %221 = vmatprep.subr.mxu0 0.0
    %222 = vmatpush1.xpose.msra.mxu0 0.0
    %223 = vmatprep.subr.mxu0 0.0
    %224 = vmatpush1.xpose.msra.mxu0 0.0
    %225 = vmatprep.subr.mxu0 0.0
    %226 = vmatpush1.xpose.msra.mxu0 0.0
    %227 = vmatprep.subr.mxu0 0.0
    %228 = vmatpush1.xpose.msra.mxu0 0.0
    %229 = vmatprep.subr.mxu0 0.0
    %230 = vmatpush1.xpose.msra.mxu0 0.0
    %231 = vmatprep.subr.mxu0 0.0
    %232 = vmatpush1.xpose.msra.mxu0 0.0
    %233 = vmatprep.subr.mxu0 0.0
    %234 = vmatpush1.xpose.msra.mxu0 0.0
    %235 = vmatprep.subr.mxu0 0.0
    %236 = vmatpush1.xpose.msra.mxu0 0.0
    %237 = vmatprep.subr.mxu0 0.0
    %238 = vmatpush1.xpose.msra.mxu0 0.0
    %239 = vmatprep.subr.mxu0 0.0
    %240 = vmatpush1.xpose.msra.mxu0 0.0
    %241 = vmatprep.subr.mxu0 0.0
    %242 = vmatpush1.xpose.msra.mxu0 0.0
    %243 = vmatprep.subr.mxu0 0.0
    %244 = vmatpush1.xpose.msra.mxu0 0.0
    %245 = vmatprep.subr.mxu0 0.0
    %246 = vmatpush1.xpose.msra.mxu0 0.0
    %247 = vmatprep.subr.mxu0 0.0
    %248 = vmatpush1.xpose.msra.mxu0 0.0
    %249 = vmatprep.subr.mxu0 0.0
    %250 = vmatpush1.xpose.msra.mxu0 0.0
    %251 = vmatprep.subr.mxu0 0.0
    %252 = vmatpush1.xpose.msra.mxu0 0.0
    %253 = vmatprep.subr.mxu0 0.0
    %254 = vmatpush1.xpose.msra.mxu0 0.0
    %255 = vmatprep.mubr.f32.mxu0 0.0
    %256 = vmatmul.mubr.f32.gmra.mrb[0].mxu0 %v186
    %v257 = vpop.f32.mrb[0].mxu0
    %v258 = vadd.f32 0.0, %v257
    %v259 = vpop.f32.mrb[0].mxu0
    %260 = vdwg.mxu0
    %v262 = vsel %vm108, %v102, 0
    %v265 = vsel %vm108, %v106, 0
    %267 = vmatprep.subr.mxu0 0.0
    %268 = vmatpush1.xpose.msra.mxu0 %v265
    %269 = vmatprep.subr.mxu0 0.0
    %270 = vmatpush1.xpose.msra.mxu0 0.0
    %271 = vmatprep.subr.mxu0 0.0
    %272 = vmatpush1.xpose.msra.mxu0 0.0
    %273 = vmatprep.subr.mxu0 0.0
    %274 = vmatpush1.xpose.msra.mxu0 0.0
    %275 = vmatprep.subr.mxu0 0.0
    %276 = vmatpush1.xpose.msra.mxu0 0.0
    %277 = vmatprep.subr.mxu0 0.0
    %278 = vmatpush1.xpose.msra.mxu0 0.0
    %279 = vmatprep.subr.mxu0 0.0
    %280 = vmatpush1.xpose.msra.mxu0 0.0
    %281 = vmatprep.subr.mxu0 0.0
    %282 = vmatpush1.xpose.msra.mxu0 0.0
    %283 = vmatprep.subr.mxu0 0.0
    %284 = vmatpush1.xpose.msra.mxu0 0.0
    %285 = vmatprep.subr.mxu0 0.0
    %286 = vmatpush1.xpose.msra.mxu0 0.0
    %287 = vmatprep.subr.mxu0 0.0
    %288 = vmatpush1.xpose.msra.mxu0 0.0
    %289 = vmatprep.subr.mxu0 0.0
    %290 = vmatpush1.xpose.msra.mxu0 0.0
    %291 = vmatprep.subr.mxu0 0.0
    %292 = vmatpush1.xpose.msra.mxu0 0.0
    %293 = vmatprep.subr.mxu0 0.0
    %294 = vmatpush1.xpose.msra.mxu0 0.0
    %295 = vmatprep.subr.mxu0 0.0
    %296 = vmatpush1.xpose.msra.mxu0 0.0
    %297 = vmatprep.subr.mxu0 0.0
    %298 = vmatpush1.xpose.msra.mxu0 0.0
    %299 = vmatprep.subr.mxu0 0.0
    %300 = vmatpush1.xpose.msra.mxu0 0.0
    %301 = vmatprep.subr.mxu0 0.0
    %302 = vmatpush1.xpose.msra.mxu0 0.0
    %303 = vmatprep.subr.mxu0 0.0
    %304 = vmatpush1.xpose.msra.mxu0 0.0
    %305 = vmatprep.subr.mxu0 0.0
    %306 = vmatpush1.xpose.msra.mxu0 0.0
    %307 = vmatprep.subr.mxu0 0.0
    %308 = vmatpush1.xpose.msra.mxu0 0.0
    %309 = vmatprep.subr.mxu0 0.0
    %310 = vmatpush1.xpose.msra.mxu0 0.0
    %311 = vmatprep.subr.mxu0 0.0
    %312 = vmatpush1.xpose.msra.mxu0 0.0
    %313 = vmatprep.subr.mxu0 0.0
    %314 = vmatpush1.xpose.msra.mxu0 0.0
    %315 = vmatprep.subr.mxu0 0.0
    %316 = vmatpush1.xpose.msra.mxu0 0.0
    %317 = vmatprep.subr.mxu0 0.0
    %318 = vmatpush1.xpose.msra.mxu0 0.0
    %319 = vmatprep.subr.mxu0 0.0
    %320 = vmatpush1.xpose.msra.mxu0 0.0
    %321 = vmatprep.subr.mxu0 0.0
    %322 = vmatpush1.xpose.msra.mxu0 0.0
    %323 = vmatprep.subr.mxu0 0.0
    %324 = vmatpush1.xpose.msra.mxu0 0.0
    %325 = vmatprep.subr.mxu0 0.0
    %326 = vmatpush1.xpose.msra.mxu0 0.0
    %327 = vmatprep.subr.mxu0 0.0
    %328 = vmatpush1.xpose.msra.mxu0 0.0
    %329 = vmatprep.subr.mxu0 0.0
    %330 = vmatpush1.xpose.msra.mxu0 0.0
    %331 = vmatprep.mubr.f32.mxu0 0.0
    %332 = vmatmul.mubr.f32.gmra.mrb[0].mxu0 %v262
    %v333 = vpop.f32.mrb[0].mxu0
    %v334 = vadd.f32 0.0, %v333
    %v335 = vpop.f32.mrb[0].mxu0
    %336 = vdwg.mxu0
    %v338 = vsel %vm108, %v103, 0
    %v341 = vsel %vm108, %v107, 0
    %343 = vmatprep.subr.mxu0 0.0
    %344 = vmatpush1.xpose.msra.mxu0 %v341
    %345 = vmatprep.subr.mxu0 0.0
    %346 = vmatpush1.xpose.msra.mxu0 0.0
    %347 = vmatprep.subr.mxu0 0.0
    %348 = vmatpush1.xpose.msra.mxu0 0.0
    %349 = vmatprep.subr.mxu0 0.0
    %350 = vmatpush1.xpose.msra.mxu0 0.0
    %351 = vmatprep.subr.mxu0 0.0
    %352 = vmatpush1.xpose.msra.mxu0 0.0
    %353 = vmatprep.subr.mxu0 0.0
    %354 = vmatpush1.xpose.msra.mxu0 0.0
    %355 = vmatprep.subr.mxu0 0.0
    %356 = vmatpush1.xpose.msra.mxu0 0.0
    %357 = vmatprep.subr.mxu0 0.0
    %358 = vmatpush1.xpose.msra.mxu0 0.0
    %359 = vmatprep.subr.mxu0 0.0
    %360 = vmatpush1.xpose.msra.mxu0 0.0
    %361 = vmatprep.subr.mxu0 0.0
    %362 = vmatpush1.xpose.msra.mxu0 0.0
    %363 = vmatprep.subr.mxu0 0.0
    %364 = vmatpush1.xpose.msra.mxu0 0.0
    %365 = vmatprep.subr.mxu0 0.0
    %366 = vmatpush1.xpose.msra.mxu0 0.0
    %367 = vmatprep.subr.mxu0 0.0
    %368 = vmatpush1.xpose.msra.mxu0 0.0
    %369 = vmatprep.subr.mxu0 0.0
    %370 = vmatpush1.xpose.msra.mxu0 0.0
    %371 = vmatprep.subr.mxu0 0.0
    %372 = vmatpush1.xpose.msra.mxu0 0.0
    %373 = vmatprep.subr.mxu0 0.0
    %374 = vmatpush1.xpose.msra.mxu0 0.0
    %375 = vmatprep.subr.mxu0 0.0
    %376 = vmatpush1.xpose.msra.mxu0 0.0
    %377 = vmatprep.subr.mxu0 0.0
    %378 = vmatpush1.xpose.msra.mxu0 0.0
    %379 = vmatprep.subr.mxu0 0.0
    %380 = vmatpush1.xpose.msra.mxu0 0.0
    %381 = vmatprep.subr.mxu0 0.0
    %382 = vmatpush1.xpose.msra.mxu0 0.0
    %383 = vmatprep.subr.mxu0 0.0
    %384 = vmatpush1.xpose.msra.mxu0 0.0
    %385 = vmatprep.subr.mxu0 0.0
    %386 = vmatpush1.xpose.msra.mxu0 0.0
    %387 = vmatprep.subr.mxu0 0.0
    %388 = vmatpush1.xpose.msra.mxu0 0.0
    %389 = vmatprep.subr.mxu0 0.0
    %390 = vmatpush1.xpose.msra.mxu0 0.0
    %391 = vmatprep.subr.mxu0 0.0
    %392 = vmatpush1.xpose.msra.mxu0 0.0
    %393 = vmatprep.subr.mxu0 0.0
    %394 = vmatpush1.xpose.msra.mxu0 0.0
    %395 = vmatprep.subr.mxu0 0.0
    %396 = vmatpush1.xpose.msra.mxu0 0.0
    %397 = vmatprep.subr.mxu0 0.0
    %398 = vmatpush1.xpose.msra.mxu0 0.0
    %399 = vmatprep.subr.mxu0 0.0
    %400 = vmatpush1.xpose.msra.mxu0 0.0
    %401 = vmatprep.subr.mxu0 0.0
    %402 = vmatpush1.xpose.msra.mxu0 0.0
    %403 = vmatprep.subr.mxu0 0.0
    %404 = vmatpush1.xpose.msra.mxu0 0.0
    %405 = vmatprep.subr.mxu0 0.0
    %406 = vmatpush1.xpose.msra.mxu0 0.0
    %407 = vmatprep.mubr.f32.mxu0 0.0
    %408 = vmatmul.mubr.f32.gmra.mrb[0].mxu0 %v338
    %v409 = vpop.f32.mrb[0].mxu0
    %v410 = vadd.f32 0.0, %v409
    %v411 = vpop.f32.mrb[0].mxu0
    %412 = vdwg.mxu0
    %v413 = vld [vmem:[#allocation3] sm:$0xff]
    %v414 = vld [vmem:[#allocation3 + $0x8] sm:$0xff]
    %v415 = vld [vmem:[#allocation3 + $0x10] sm:$0xff]
    %v416 = vld [vmem:[#allocation3 + $0x18] sm:$0xff]
    %vm417 = vcmask 64512
    %v418 = vsel %vm417, %v182, -inf
    %419 = vmax.xlane.f32.xlu0 %v418
    %v420 = vpop.xlane.xlu0 %419
    %v421 = vsel %vm417, %v258, -inf
    %422 = vmax.xlane.f32.xlu0 %v421
    %v423 = vpop.xlane.xlu0 %422
    %v424 = vsel %vm417, %v334, -inf
    %425 = vmax.xlane.f32.xlu0 %v424
    %v426 = vpop.xlane.xlu0 %425
    %v427 = vsel %vm417, %v410, -inf
    %428 = vmax.xlane.f32.xlu0 %v427
    %v429 = vpop.xlane.xlu0 %428
    %v430 = vmax.f32 %v413, %v420
    %v431 = vmax.f32 %v414, %v423
    %v432 = vmax.f32 %v415, %v426
    %v433 = vmax.f32 %v416, %v429
    %v434 = vsub.f32 %v413, %v430
    %v435 = vsub.f32 %v414, %v431
    %v436 = vsub.f32 %v415, %v432
    %v437 = vsub.f32 %v416, %v433
    %v438 = vmul.f32 %v434, 1.442695
    %v439 = vpow.pop %v438
    %v440 = vmul.f32 %v435, 1.442695
    %v441 = vpow.pop %v440
    %v442 = vmul.f32 %v436, 1.442695
    %v443 = vpow.pop %v442
    %v444 = vmul.f32 %v437, 1.442695
    %v445 = vpow.pop %v444
    %447 = vset.pattern.permute.xlu0 0
    %448 = vperm.xlu0 %447, %v430
    %v449 = vpop.permute.xlu0 %448
    %452 = vset.pattern.permute.xlu0 0
    %453 = vperm.xlu0 %452, %v431
    %v454 = vpop.permute.xlu0 %453
    %457 = vset.pattern.permute.xlu0 0
    %458 = vperm.xlu0 %457, %v432
    %v459 = vpop.permute.xlu0 %458
    %462 = vset.pattern.permute.xlu0 0
    %463 = vperm.xlu0 %462, %v433
    %v464 = vpop.permute.xlu0 %463
    %v466 = vsub.f32 %v182, %v449
    %v467 = vsub.f32 %v258, %v454
    %v468 = vsub.f32 %v334, %v459
    %v469 = vsub.f32 %v410, %v464
    %v470 = vmul.f32 %v466, 1.442695
    %v471 = vpow.pop %v470
    %v472 = vmul.f32 %v467, 1.442695
    %v473 = vpow.pop %v472
    %v474 = vmul.f32 %v468, 1.442695
    %v475 = vpow.pop %v474
    %v476 = vmul.f32 %v469, 1.442695
    %v477 = vpow.pop %v476
    %v478 = vld [vmem:[#allocation4] sm:$0xff]
    %v479 = vld [vmem:[#allocation4 + $0x8] sm:$0xff]
    %v480 = vld [vmem:[#allocation4 + $0x10] sm:$0xff]
    %v481 = vld [vmem:[#allocation4 + $0x18] sm:$0xff]
    %v482 = vmul.f32 %v439, %v478
    %v483 = vmul.f32 %v441, %v479
    %v484 = vmul.f32 %v443, %v480
    %v485 = vmul.f32 %v445, %v481
    %v486 = vsel %vm417, %v471, 0.0
    %487 = vadd.xlane.f32.xlu0 %v486
    %v488 = vpop.xlane.xlu0 %487
    %v489 = vsel %vm417, %v473, 0.0
    %490 = vadd.xlane.f32.xlu0 %v489
    %v491 = vpop.xlane.xlu0 %490
    %v492 = vsel %vm417, %v475, 0.0
    %493 = vadd.xlane.f32.xlu0 %v492
    %v494 = vpop.xlane.xlu0 %493
    %v495 = vsel %vm417, %v477, 0.0
    %496 = vadd.xlane.f32.xlu0 %v495
    %v497 = vpop.xlane.xlu0 %496
    %v498 = vadd.f32 %v482, %v488
    %v499 = vadd.f32 %v483, %v491
    %v500 = vadd.f32 %v484, %v494
    %v501 = vadd.f32 %v485, %v497
    %vm502 = vcmask 7168
    %503 = vst.msk [vmem:[#allocation4] sm:$0xff] %vm502, %v498
    %504 = vst.msk [vmem:[#allocation4 + $0x8] sm:$0xff] %vm502, %v499
    %505 = vst.msk [vmem:[#allocation4 + $0x10] sm:$0xff] %vm502, %v500
    %506 = vst.msk [vmem:[#allocation4 + $0x18] sm:$0xff] %vm502, %v501
    %v507 = vld [vmem:[#allocation5] sm:$0xff]
    %v508 = vld [vmem:[#allocation5 + $0x8] sm:$0xff]
    %v509 = vld [vmem:[#allocation5 + $0x10] sm:$0xff]
    %v510 = vld [vmem:[#allocation5 + $0x18] sm:$0xff]
    %512 = vset.pattern.permute.xlu0 0
    %513 = vperm.xlu0 %512, %v439
    %v514 = vpop.permute.xlu0 %513
    %517 = vset.pattern.permute.xlu0 0
    %518 = vperm.xlu0 %517, %v441
    %v519 = vpop.permute.xlu0 %518
    %522 = vset.pattern.permute.xlu0 0
    %523 = vperm.xlu0 %522, %v443
    %v524 = vpop.permute.xlu0 %523
    %527 = vset.pattern.permute.xlu0 0
    %528 = vperm.xlu0 %527, %v445
    %v529 = vpop.permute.xlu0 %528
    %v531 = vmul.f32 %v514, %v507
    %v532 = vmul.f32 %v519, %v508
    %v533 = vmul.f32 %v524, %v509
    %v534 = vmul.f32 %v529, %v510
    %v535 = vld [vmem:[#allocation9] sm:$0xff]
    %v536 = vld [vmem:[#allocation9 + $0x8] sm:$0xff]
    %v537 = vld [vmem:[#allocation9 + $0x10] sm:$0xff]
    %v538 = vld [vmem:[#allocation9 + $0x18] sm:$0xff]
    %v540 = vsel %vm417, %v471, 0
    %542 = vmatprep.subr.mxu0 0.0
    %543 = vmatpush1.msra.mxu0 %v535
    %544 = vmatprep.subr.mxu0 0.0
    %545 = vmatpush1.msra.mxu0 0.0
    %546 = vmatprep.subr.mxu0 0.0
    %547 = vmatpush1.msra.mxu0 0.0
    %548 = vmatprep.subr.mxu0 0.0
    %549 = vmatpush1.msra.mxu0 0.0
    %550 = vmatprep.subr.mxu0 0.0
    %551 = vmatpush1.msra.mxu0 0.0
    %552 = vmatprep.subr.mxu0 0.0
    %553 = vmatpush1.msra.mxu0 0.0
    %554 = vmatprep.subr.mxu0 0.0
    %555 = vmatpush1.msra.mxu0 0.0
    %556 = vmatprep.subr.mxu0 0.0
    %557 = vmatpush1.msra.mxu0 0.0
    %558 = vmatprep.subr.mxu0 0.0
    %559 = vmatpush1.msra.mxu0 0.0
    %560 = vmatprep.subr.mxu0 0.0
    %561 = vmatpush1.msra.mxu0 0.0
    %562 = vmatprep.subr.mxu0 0.0
    %563 = vmatpush1.msra.mxu0 0.0
    %564 = vmatprep.subr.mxu0 0.0
    %565 = vmatpush1.msra.mxu0 0.0
    %566 = vmatprep.subr.mxu0 0.0
    %567 = vmatpush1.msra.mxu0 0.0
    %568 = vmatprep.subr.mxu0 0.0
    %569 = vmatpush1.msra.mxu0 0.0
    %570 = vmatprep.subr.mxu0 0.0
    %571 = vmatpush1.msra.mxu0 0.0
    %572 = vmatprep.subr.mxu0 0.0
    %573 = vmatpush1.msra.mxu0 0.0
    %574 = vmatprep.subr.mxu0 0.0
    %575 = vmatpush1.msra.mxu0 0.0
    %576 = vmatprep.subr.mxu0 0.0
    %577 = vmatpush1.msra.mxu0 0.0
    %578 = vmatprep.subr.mxu0 0.0
    %579 = vmatpush1.msra.mxu0 0.0
    %580 = vmatprep.subr.mxu0 0.0
    %581 = vmatpush1.msra.mxu0 0.0
    %582 = vmatprep.subr.mxu0 0.0
    %583 = vmatpush1.msra.mxu0 0.0
    %584 = vmatprep.subr.mxu0 0.0
    %585 = vmatpush1.msra.mxu0 0.0
    %586 = vmatprep.subr.mxu0 0.0
    %587 = vmatpush1.msra.mxu0 0.0
    %588 = vmatprep.subr.mxu0 0.0
    %589 = vmatpush1.msra.mxu0 0.0
    %590 = vmatprep.subr.mxu0 0.0
    %591 = vmatpush1.msra.mxu0 0.0
    %592 = vmatprep.subr.mxu0 0.0
    %593 = vmatpush1.msra.mxu0 0.0
    %594 = vmatprep.subr.mxu0 0.0
    %595 = vmatpush1.msra.mxu0 0.0
    %596 = vmatprep.subr.mxu0 0.0
    %597 = vmatpush1.msra.mxu0 0.0
    %598 = vmatprep.subr.mxu0 0.0
    %599 = vmatpush1.msra.mxu0 0.0
    %600 = vmatprep.subr.mxu0 0.0
    %601 = vmatpush1.msra.mxu0 0.0
    %602 = vmatprep.subr.mxu0 0.0
    %603 = vmatpush1.msra.mxu0 0.0
    %604 = vmatprep.subr.mxu0 0.0
    %605 = vmatpush1.msra.mxu0 0.0
    %606 = vmatprep.mubr.f32.mxu0 0.0
    %607 = vmatmul.mubr.f32.gmra.mrb[0].mxu0 %v540
    %v608 = vpop.f32.mrb[0].mxu0
    %v609 = vadd.f32 0.0, %v608
    %v610 = vpop.f32.mrb[0].mxu0
    %611 = vdwg.mxu0
    %v613 = vsel %vm417, %v473, 0
    %615 = vmatprep.subr.mxu0 0.0
    %616 = vmatpush1.msra.mxu0 %v536
    %617 = vmatprep.subr.mxu0 0.0
    %618 = vmatpush1.msra.mxu0 0.0
    %619 = vmatprep.subr.mxu0 0.0
    %620 = vmatpush1.msra.mxu0 0.0
    %621 = vmatprep.subr.mxu0 0.0
    %622 = vmatpush1.msra.mxu0 0.0
    %623 = vmatprep.subr.mxu0 0.0
    %624 = vmatpush1.msra.mxu0 0.0
    %625 = vmatprep.subr.mxu0 0.0
    %626 = vmatpush1.msra.mxu0 0.0
    %627 = vmatprep.subr.mxu0 0.0
    %628 = vmatpush1.msra.mxu0 0.0
    %629 = vmatprep.subr.mxu0 0.0
    %630 = vmatpush1.msra.mxu0 0.0
    %631 = vmatprep.subr.mxu0 0.0
    %632 = vmatpush1.msra.mxu0 0.0
    %633 = vmatprep.subr.mxu0 0.0
    %634 = vmatpush1.msra.mxu0 0.0
    %635 = vmatprep.subr.mxu0 0.0
    %636 = vmatpush1.msra.mxu0 0.0
    %637 = vmatprep.subr.mxu0 0.0
    %638 = vmatpush1.msra.mxu0 0.0
    %639 = vmatprep.subr.mxu0 0.0
    %640 = vmatpush1.msra.mxu0 0.0
    %641 = vmatprep.subr.mxu0 0.0
    %642 = vmatpush1.msra.mxu0 0.0
    %643 = vmatprep.subr.mxu0 0.0
    %644 = vmatpush1.msra.mxu0 0.0
    %645 = vmatprep.subr.mxu0 0.0
    %646 = vmatpush1.msra.mxu0 0.0
    %647 = vmatprep.subr.mxu0 0.0
    %648 = vmatpush1.msra.mxu0 0.0
    %649 = vmatprep.subr.mxu0 0.0
    %650 = vmatpush1.msra.mxu0 0.0
    %651 = vmatprep.subr.mxu0 0.0
    %652 = vmatpush1.msra.mxu0 0.0
    %653 = vmatprep.subr.mxu0 0.0
    %654 = vmatpush1.msra.mxu0 0.0
    %655 = vmatprep.subr.mxu0 0.0
    %656 = vmatpush1.msra.mxu0 0.0
    %657 = vmatprep.subr.mxu0 0.0
    %658 = vmatpush1.msra.mxu0 0.0
    %659 = vmatprep.subr.mxu0 0.0
    %660 = vmatpush1.msra.mxu0 0.0
    %661 = vmatprep.subr.mxu0 0.0
    %662 = vmatpush1.msra.mxu0 0.0
    %663 = vmatprep.subr.mxu0 0.0
    %664 = vmatpush1.msra.mxu0 0.0
    %665 = vmatprep.subr.mxu0 0.0
    %666 = vmatpush1.msra.mxu0 0.0
    %667 = vmatprep.subr.mxu0 0.0
    %668 = vmatpush1.msra.mxu0 0.0
    %669 = vmatprep.subr.mxu0 0.0
    %670 = vmatpush1.msra.mxu0 0.0
    %671 = vmatprep.subr.mxu0 0.0
    %672 = vmatpush1.msra.mxu0 0.0
    %673 = vmatprep.subr.mxu0 0.0
    %674 = vmatpush1.msra.mxu0 0.0
    %675 = vmatprep.subr.mxu0 0.0
    %676 = vmatpush1.msra.mxu0 0.0
    %677 = vmatprep.subr.mxu0 0.0
    %678 = vmatpush1.msra.mxu0 0.0
    %679 = vmatprep.mubr.f32.mxu0 0.0
    %680 = vmatmul.mubr.f32.gmra.mrb[0].mxu0 %v613
    %v681 = vpop.f32.mrb[0].mxu0
    %v682 = vadd.f32 0.0, %v681
    %v683 = vpop.f32.mrb[0].mxu0
    %684 = vdwg.mxu0
    %v686 = vsel %vm417, %v475, 0
    %688 = vmatprep.subr.mxu0 0.0
    %689 = vmatpush1.msra.mxu0 %v537
    %690 = vmatprep.subr.mxu0 0.0
    %691 = vmatpush1.msra.mxu0 0.0
    %692 = vmatprep.subr.mxu0 0.0
    %693 = vmatpush1.msra.mxu0 0.0
    %694 = vmatprep.subr.mxu0 0.0
    %695 = vmatpush1.msra.mxu0 0.0
    %696 = vmatprep.subr.mxu0 0.0
    %697 = vmatpush1.msra.mxu0 0.0
    %698 = vmatprep.subr.mxu0 0.0
    %699 = vmatpush1.msra.mxu0 0.0
    %700 = vmatprep.subr.mxu0 0.0
    %701 = vmatpush1.msra.mxu0 0.0
    %702 = vmatprep.subr.mxu0 0.0
    %703 = vmatpush1.msra.mxu0 0.0
    %704 = vmatprep.subr.mxu0 0.0
    %705 = vmatpush1.msra.mxu0 0.0
    %706 = vmatprep.subr.mxu0 0.0
    %707 = vmatpush1.msra.mxu0 0.0
    %708 = vmatprep.subr.mxu0 0.0
    %709 = vmatpush1.msra.mxu0 0.0
    %710 = vmatprep.subr.mxu0 0.0
    %711 = vmatpush1.msra.mxu0 0.0
    %712 = vmatprep.subr.mxu0 0.0
    %713 = vmatpush1.msra.mxu0 0.0
    %714 = vmatprep.subr.mxu0 0.0
    %715 = vmatpush1.msra.mxu0 0.0
    %716 = vmatprep.subr.mxu0 0.0
    %717 = vmatpush1.msra.mxu0 0.0
    %718 = vmatprep.subr.mxu0 0.0
    %719 = vmatpush1.msra.mxu0 0.0
    %720 = vmatprep.subr.mxu0 0.0
    %721 = vmatpush1.msra.mxu0 0.0
    %722 = vmatprep.subr.mxu0 0.0
    %723 = vmatpush1.msra.mxu0 0.0
    %724 = vmatprep.subr.mxu0 0.0
    %725 = vmatpush1.msra.mxu0 0.0
    %726 = vmatprep.subr.mxu0 0.0
    %727 = vmatpush1.msra.mxu0 0.0
    %728 = vmatprep.subr.mxu0 0.0
    %729 = vmatpush1.msra.mxu0 0.0
    %730 = vmatprep.subr.mxu0 0.0
    %731 = vmatpush1.msra.mxu0 0.0
    %732 = vmatprep.subr.mxu0 0.0
    %733 = vmatpush1.msra.mxu0 0.0
    %734 = vmatprep.subr.mxu0 0.0
    %735 = vmatpush1.msra.mxu0 0.0
    %736 = vmatprep.subr.mxu0 0.0
    %737 = vmatpush1.msra.mxu0 0.0
    %738 = vmatprep.subr.mxu0 0.0
    %739 = vmatpush1.msra.mxu0 0.0
    %740 = vmatprep.subr.mxu0 0.0
    %741 = vmatpush1.msra.mxu0 0.0
    %742 = vmatprep.subr.mxu0 0.0
    %743 = vmatpush1.msra.mxu0 0.0
    %744 = vmatprep.subr.mxu0 0.0
    %745 = vmatpush1.msra.mxu0 0.0
    %746 = vmatprep.subr.mxu0 0.0
    %747 = vmatpush1.msra.mxu0 0.0
    %748 = vmatprep.subr.mxu0 0.0
    %749 = vmatpush1.msra.mxu0 0.0
    %750 = vmatprep.subr.mxu0 0.0
    %751 = vmatpush1.msra.mxu0 0.0
    %752 = vmatprep.mubr.f32.mxu0 0.0
    %753 = vmatmul.mubr.f32.gmra.mrb[0].mxu0 %v686
    %v754 = vpop.f32.mrb[0].mxu0
    %v755 = vadd.f32 0.0, %v754
    %v756 = vpop.f32.mrb[0].mxu0
    %757 = vdwg.mxu0
    %v759 = vsel %vm417, %v477, 0
    %761 = vmatprep.subr.mxu0 0.0
    %762 = vmatpush1.msra.mxu0 %v538
    %763 = vmatprep.subr.mxu0 0.0
    %764 = vmatpush1.msra.mxu0 0.0
    %765 = vmatprep.subr.mxu0 0.0
    %766 = vmatpush1.msra.mxu0 0.0
    %767 = vmatprep.subr.mxu0 0.0
    %768 = vmatpush1.msra.mxu0 0.0
    %769 = vmatprep.subr.mxu0 0.0
    %770 = vmatpush1.msra.mxu0 0.0
    %771 = vmatprep.subr.mxu0 0.0
    %772 = vmatpush1.msra.mxu0 0.0
    %773 = vmatprep.subr.mxu0 0.0
    %774 = vmatpush1.msra.mxu0 0.0
    %775 = vmatprep.subr.mxu0 0.0
    %776 = vmatpush1.msra.mxu0 0.0
    %777 = vmatprep.subr.mxu0 0.0
    %778 = vmatpush1.msra.mxu0 0.0
    %779 = vmatprep.subr.mxu0 0.0
    %780 = vmatpush1.msra.mxu0 0.0
    %781 = vmatprep.subr.mxu0 0.0
    %782 = vmatpush1.msra.mxu0 0.0
    %783 = vmatprep.subr.mxu0 0.0
    %784 = vmatpush1.msra.mxu0 0.0
    %785 = vmatprep.subr.mxu0 0.0
    %786 = vmatpush1.msra.mxu0 0.0
    %787 = vmatprep.subr.mxu0 0.0
    %788 = vmatpush1.msra.mxu0 0.0
    %789 = vmatprep.subr.mxu0 0.0
    %790 = vmatpush1.msra.mxu0 0.0
    %791 = vmatprep.subr.mxu0 0.0
    %792 = vmatpush1.msra.mxu0 0.0
    %793 = vmatprep.subr.mxu0 0.0
    %794 = vmatpush1.msra.mxu0 0.0
    %795 = vmatprep.subr.mxu0 0.0
    %796 = vmatpush1.msra.mxu0 0.0
    %797 = vmatprep.subr.mxu0 0.0
    %798 = vmatpush1.msra.mxu0 0.0
    %799 = vmatprep.subr.mxu0 0.0
    %800 = vmatpush1.msra.mxu0 0.0
    %801 = vmatprep.subr.mxu0 0.0
    %802 = vmatpush1.msra.mxu0 0.0
    %803 = vmatprep.subr.mxu0 0.0
    %804 = vmatpush1.msra.mxu0 0.0
    %805 = vmatprep.subr.mxu0 0.0
    %806 = vmatpush1.msra.mxu0 0.0
    %807 = vmatprep.subr.mxu0 0.0
    %808 = vmatpush1.msra.mxu0 0.0
    %809 = vmatprep.subr.mxu0 0.0
    %810 = vmatpush1.msra.mxu0 0.0
    %811 = vmatprep.subr.mxu0 0.0
    %812 = vmatpush1.msra.mxu0 0.0
    %813 = vmatprep.subr.mxu0 0.0
    %814 = vmatpush1.msra.mxu0 0.0
    %815 = vmatprep.subr.mxu0 0.0
    %816 = vmatpush1.msra.mxu0 0.0
    %817 = vmatprep.subr.mxu0 0.0
    %818 = vmatpush1.msra.mxu0 0.0
    %819 = vmatprep.subr.mxu0 0.0
    %820 = vmatpush1.msra.mxu0 0.0
    %821 = vmatprep.subr.mxu0 0.0
    %822 = vmatpush1.msra.mxu0 0.0
    %823 = vmatprep.subr.mxu0 0.0
    %824 = vmatpush1.msra.mxu0 0.0
    %825 = vmatprep.mubr.f32.mxu0 0.0
    %826 = vmatmul.mubr.f32.gmra.mrb[0].mxu0 %v759
    %v827 = vpop.f32.mrb[0].mxu0
    %v828 = vadd.f32 0.0, %v827
    %v829 = vpop.f32.mrb[0].mxu0
    %830 = vdwg.mxu0
    %v831 = vadd.f32 %v531, %v609
    %v832 = vadd.f32 %v532, %v682
    %v833 = vadd.f32 %v533, %v755
    %v834 = vadd.f32 %v534, %v828
    %835 = vst.msk [vmem:[#allocation5] sm:$0xff] %vm108, %v831
    %836 = vst.msk [vmem:[#allocation5 + $0x8] sm:$0xff] %vm108, %v832
    %837 = vst.msk [vmem:[#allocation5 + $0x10] sm:$0xff] %vm108, %v833
    %838 = vst.msk [vmem:[#allocation5 + $0x18] sm:$0xff] %vm108, %v834
    %839 = vst.msk [vmem:[#allocation3] sm:$0xff] %vm502, %v430
    %840 = vst.msk [vmem:[#allocation3 + $0x8] sm:$0xff] %vm502, %v431
    %841 = vst.msk [vmem:[#allocation3 + $0x10] sm:$0xff] %vm502, %v432
    %842 = vst.msk [vmem:[#allocation3 + $0x18] sm:$0xff] %vm502, %v433
    // Predicated region
    $region30: #{tpu_custom_call.1} parent=1 // pred_check
      %p843 = pneg %p46
    $region31: #{tpu_custom_call.1} parent=1 // pred_check_branch
      %845 = sbr.rel (%p843) target = $region33
    $region32: #{tpu_custom_call.1} parent=1 // pred_region
      %v846 = vld [vmem:[#allocation4] sm:$0xff]
      %v847 = vld [vmem:[#allocation4 + $0x8] sm:$0xff]
      %v848 = vld [vmem:[#allocation4 + $0x10] sm:$0xff]
      %v849 = vld [vmem:[#allocation4 + $0x18] sm:$0xff]
      %v850 = vrcp.pop %v846
      %v851 = vrcp.pop %v847
      %v852 = vrcp.pop %v848
      %v853 = vrcp.pop %v849
      %v854 = vmul.f32 %v846, %v850
      %v855 = vmul.f32 %v847, %v851
      %v856 = vmul.f32 %v848, %v852
      %v857 = vmul.f32 %v849, %v853
      %v858 = vsub.f32 2.0, %v854
      %v859 = vsub.f32 2.0, %v855
      %v860 = vsub.f32 2.0, %v856
      %v861 = vsub.f32 2.0, %v857
      %v862 = vmul.f32 %v850, %v858
      %v863 = vmul.f32 %v851, %v859
      %v864 = vmul.f32 %v852, %v860
      %v865 = vmul.f32 %v853, %v861
      %v866 = vld [vmem:[#allocation5] sm:$0xff]
      %v867 = vld [vmem:[#allocation5 + $0x8] sm:$0xff]
      %v868 = vld [vmem:[#allocation5 + $0x10] sm:$0xff]
      %v869 = vld [vmem:[#allocation5 + $0x18] sm:$0xff]
      %871 = vset.pattern.permute.xlu0 0
      %872 = vperm.xlu0 %871, %v862
      %v873 = vpop.permute.xlu0 %872
      %876 = vset.pattern.permute.xlu0 0
      %877 = vperm.xlu0 %876, %v863
      %v878 = vpop.permute.xlu0 %877
      %881 = vset.pattern.permute.xlu0 0
      %882 = vperm.xlu0 %881, %v864
      %v883 = vpop.permute.xlu0 %882
      %886 = vset.pattern.permute.xlu0 0
      %887 = vperm.xlu0 %886, %v865
      %v888 = vpop.permute.xlu0 %887
      %v890 = vmul.f32 %v866, %v873
      %v891 = vmul.f32 %v867, %v878
      %v892 = vmul.f32 %v868, %v883
      %v893 = vmul.f32 %v869, %v888
      %894 = vst.msk [vmem:[#allocation11] sm:$0xff] %vm108, %v890
      %895 = vst.msk [vmem:[#allocation11 + $0x8] sm:$0xff] %vm108, %v891
      %896 = vst.msk [vmem:[#allocation11 + $0x10] sm:$0xff] %vm108, %v892
      %897 = vst.msk [vmem:[#allocation11 + $0x18] sm:$0xff] %vm108, %v893
    $region33: #{tpu_custom_call.1} parent=1 // pred_fallthru
      _
    // Predicated region
    $region34: #{tpu_custom_call.1} parent=1 // pred_check
      _
    $region35: #{tpu_custom_call.1} parent=1 // pred_check_branch
      %899 = sbr.rel (0) target = $region37
    $region36: #{tpu_custom_call.1} parent=1 // pred_region
      %s901 = ssub.s32 512, 512
      %902 = vsyncadd [#allocation8], %s901
      %s903 = sshll.u32 [#allocation11], 4
      %s904 = int_to_ptr.vmem [resolvable:$true] %s903
      %909 = dma.vmem_to_hbm [thread:$0]  %s904, 512, %s4, [#allocation8], 128, 128, 8
    $region37: #{tpu_custom_call.1} parent=1 // pred_fallthru
      _
    // Predicated region
    $region38: #{tpu_custom_call.1} parent=1 // pred_check
      _
    $region39: #{tpu_custom_call.1} parent=1 // pred_check_branch
      %911 = sbr.rel (0) target = $region41
    $region40: #{tpu_custom_call.1} parent=1 // pred_region
      %912 = dma.done [#allocation8], 512
    $region41: #{tpu_custom_call.1} parent=1 // pred_fallthru
      _
    %913 = vsyncpa [#allocation7], 1
    %914 = vsyncpa [#allocation10], 1
    %915 = vsyncpa [#allocation8], 1

</llo_original>
